<compile_context>
chip_gen: v6e
topology: v6e:2x2x1
jax: 0.10.0
libtpu: 0.0.40
codegen_flags: <defaults>
</compile_context>

<pallas_src>
import jax
import jax.numpy as jnp
from jax.experimental import pallas as pl
from jax.experimental.pallas import tpu as pltpu

_MAX_DMA_CHUNKS = 4          # a handful of in-flight DMAs is enough to saturate HBM
_MIN_CHUNK_BYTES = 1 << 20   # don't split copies below ~1 MiB per chunk


def _make_copy_kernel(row_starts, row_counts, full_copy):
    """Build an HBM->HBM copy kernel for the given static row partition."""
    num = len(row_starts)

    def kernel(x_ref, o_ref, sem):
        if full_copy:
            # Single whole-slab DMA: HBM -> HBM, no VMEM staging.
            cp = pltpu.make_async_copy(x_ref, o_ref, sem.at[0])
            cp.start()
            cp.wait()
            return
        # A few concurrent chunked DMAs along the batch dim: start all, then
        # wait all, so multiple DMA engines overlap on large copies.
        copies = []
        for c in range(num):
            src = x_ref.at[pl.ds(row_starts[c], row_counts[c]), :]
            dst = o_ref.at[pl.ds(row_starts[c], row_counts[c]), :]
            cp = pltpu.make_async_copy(src, dst, sem.at[c])
            cp.start()
            copies.append(cp)
        for cp in copies:
            cp.wait()

    return kernel


def _flatten_copy(x2d, *, max_chunks=_MAX_DMA_CHUNKS, min_chunk_bytes=_MIN_CHUNK_BYTES):
    """Physically copy the flattened (N, D) slab via direct HBM->HBM DMA."""
    n, d = x2d.shape
    itemsize = jnp.dtype(x2d.dtype).itemsize
    total_bytes = n * d * itemsize

    # Static chunking policy (shapes are static at trace time).
    if n >= 2 and total_bytes >= 2 * min_chunk_bytes:
        num = int(min(n, max_chunks, total_bytes // min_chunk_bytes))
    else:
        num = 1

    base, rem = divmod(n, num)
    row_starts, row_counts, start = [], [], 0
    for c in range(num):
        cnt = base + (1 if c < rem else 0)
        row_starts.append(start)
        row_counts.append(cnt)
        start += cnt

    kernel = _make_copy_kernel(tuple(row_starts), tuple(row_counts),
                               full_copy=(num == 1))

    return pl.pallas_call(
        kernel,
        out_shape=jax.ShapeDtypeStruct((n, d), x2d.dtype),
        in_specs=[pl.BlockSpec(memory_space=pl.ANY)],
        out_specs=pl.BlockSpec(memory_space=pl.ANY),
        scratch_shapes=[pltpu.SemaphoreType.DMA((num,))],
    )(x2d)


def flatten(x, *, materialize=False):
    """Pallas equivalent of torch Flatten: (N, ...) -> (N, prod(rest)).

    Default path is the zero-cost reshape (no kernel, no HBM traffic), which
    matches torch's .view() semantics.  materialize=True returns a freshly
    materialized buffer via a direct HBM->HBM DMA Pallas kernel.
    """
    n = x.shape[0]
    d = 1
    for s in x.shape[1:]:
        d *= s

    x2d = jnp.reshape(x, (n, d))  # metadata-only for a contiguous input
    if not materialize or n == 0 or d == 0:
        return x2d
    return _flatten_copy(x2d)


if __name__ == "__main__":
    key = jax.random.PRNGKey(0)
    # Small NCHW activation, consistent with a conv feature map.
    x = jax.random.normal(key, (2, 4, 16, 16), dtype=jnp.float32)

    # Default path: metadata-only flatten (recommended).
    y_view = flatten(x)

    # Pallas materialize path: single whole-slab HBM->HBM DMA.
    y = flatten(x, materialize=True)
    y = jax.block_until_ready(y)

    # Also exercise the multi-chunk DMA path (force chunking on the small input).
    y_chunked = _flatten_copy(jnp.reshape(x, (x.shape[0], -1)), min_chunk_bytes=1)
    y_chunked = jax.block_until_ready(y_chunked)

    # Reference: exact torch .view(N, -1) semantics.
    y_ref = jnp.reshape(x, (x.shape[0], -1))

    assert y.shape == (2, 4 * 16 * 16), y.shape
    assert y.dtype == x.dtype
    assert bool(jnp.array_equal(y, y_ref))
    assert bool(jnp.array_equal(y_view, y_ref))
    assert bool(jnp.array_equal(y_chunked, y_ref))

    print("KERNEL_OK")
</pallas_src>

<mosaic_0001>
module attributes {stable_mosaic.version = 11 : i64} {
  func.func @kernel(%arg0: memref<2x1024xf32, #tpu.memory_space<any>>, %arg1: memref<2x1024xf32, #tpu.memory_space<any>>, %arg2: memref<1x!tpu.dma_semaphore, #tpu.memory_space<semaphore_mem>>) attributes {dimension_semantics = [], scalar_prefetch = 0 : i64, scratch_operands = 1 : i64, tpu.core_type = #tpu.core_type<tc>} {
    %c0_i32 = arith.constant 0 : i32
    %0 = tpu.memref_slice %arg2[%c0_i32] : memref<1x!tpu.dma_semaphore, #tpu.memory_space<semaphore_mem>> -> memref<1x!tpu.dma_semaphore, #tpu.memory_space<semaphore_mem>>
    %1 = tpu.memref_squeeze %0 : memref<1x!tpu.dma_semaphore, #tpu.memory_space<semaphore_mem>> -> memref<!tpu.dma_semaphore, #tpu.memory_space<semaphore_mem>>
    tpu.enqueue_dma source(%arg0 : memref<2x1024xf32, #tpu.memory_space<any>>) target(%arg1 : memref<2x1024xf32, #tpu.memory_space<any>>) target_semaphore(%1 : memref<!tpu.dma_semaphore, #tpu.memory_space<semaphore_mem>>)
    %c0_i32_0 = arith.constant 0 : i32
    %2 = tpu.memref_slice %arg2[%c0_i32_0] : memref<1x!tpu.dma_semaphore, #tpu.memory_space<semaphore_mem>> -> memref<1x!tpu.dma_semaphore, #tpu.memory_space<semaphore_mem>>
    %3 = tpu.memref_squeeze %2 : memref<1x!tpu.dma_semaphore, #tpu.memory_space<semaphore_mem>> -> memref<!tpu.dma_semaphore, #tpu.memory_space<semaphore_mem>>
    tpu.wait_dma2 semaphore(%3 : memref<!tpu.dma_semaphore, #tpu.memory_space<semaphore_mem>>) src(%arg0 : memref<2x1024xf32, #tpu.memory_space<any>>) dst(%arg1 : memref<2x1024xf32, #tpu.memory_space<any>>)
    return
  }
}

</mosaic_0001>

<llo_original>
// kernel: tpu_custom_call.1
$region0: #{tpu_custom_call.1}
  #allocation0 [shape = 'u32[]', space=smem, size = 0x4, offset = 0x4, fixed_abs, tag = 'smem constant byte address 0x4 - core index']
  #allocation1 [shape = 'u32[144,128]{1,0:T(1,128)}', space=vmem, size = 0x12000, scoped, tag = 'internal scratch']
  #allocation2 [shape = 's32[1]{0}', space=sflag, size = 0x4, scoped, tag = 'scratch operand']
  #allocation3 [shape = 's32[]', space=sflag, size = 0x4, offset = 0, fixed_abs, tag = 'sflag constant byte address 0x0 - dummy sync flag']
  #allocation4 [shape = 'u32[0]{0}', space=smem, size = 0, offset = 0, fixed_abs, tag = 'smem constant byte address 0x0 - null']
  %s0 = inlined_call_operand.hbm [shape: f32[2,1024], index: 0, kind: input, shape index: {}]
  %s1 = inlined_call_operand.hbm [shape: f32[2,1024], index: 1, kind: output, shape index: {}]
  %s2 = sld [smem:[#allocation0]]
  $region2: #{tpu_custom_call.1} parent=0
    _
  %s4 = ssub.s32 1, %s2
  %s5 = scalar_select 0, %s4, %s2
  %s7 = sshll.u32 1, 14
  %s8 = sxor.u32 4294967295, %s7
  %12 = dma.general %s0, 256, %s1, [#allocation2], 131072, [#allocation4], 0, 0
  %s13 = smul.u32 2, 1
  %s14 = smul.u32 %s13, 8
  %s15 = sshll.u32 %s14, 4
  %16 = dma.done [#allocation2], %s15
  %17 = vsyncmov [#allocation2]
  %s18 = vpop.sfrf %17
  %p19 = scmp.eq.s32.totalorder %s18, 0
  %p20 = pneg %p19
  %22 = shalt.err (%p20)

</llo_original>
